<compile_context>
chip_gen: v7x
topology: tpu7x:2x2x1
jax: 0.10.0
libtpu: 0.0.40
codegen_flags: <defaults>
</compile_context>

<pallas_src>
import jax
import jax.numpy as jnp
from jax.experimental import pallas as pl
from jax.experimental.pallas import tpu as pltpu

LN_EPS = 1e-3


def _round_up(x, m):
    return (x + m - 1) // m * m


def _make_ffn_kernel(n_h_chunks, recip_approx):
    def kernel(x_ref, w1_ref, b1_ref, w2_ref, b2_ref, g_ref, beta_ref, o_ref):
        x = x_ref[...]                                   # (TM, D), native dtype
        x_f32 = x.astype(jnp.float32)                    # residual path
        x_mm = x.astype(w1_ref.dtype)                    # MXU input (bf16 fast path)

        # Hoisted constant-operand loads (JAX doesn't CSE broadcast_in_dim).
        b2 = b2_ref[...].astype(jnp.float32)             # (1, D)
        g = g_ref[...].astype(jnp.float32)               # (1, D)
        beta = beta_ref[...].astype(jnp.float32)         # (1, D)

        def h_chunk(c, acc):
            # Chunk c of the hidden axis: relu(x @ W1[:, c] + b1[c]) @ W2[c, :]
            h = jnp.dot(x_mm, w1_ref[c], preferred_element_type=jnp.float32)
            h = jnp.maximum(h + b1_ref[c], 0.0)
            return acc + jnp.dot(h.astype(w2_ref.dtype), w2_ref[c],
                                 preferred_element_type=jnp.float32)

        y0 = jnp.zeros(x_f32.shape, jnp.float32)
        if n_h_chunks == 1:
            y = h_chunk(0, y0)
        else:
            y = jax.lax.fori_loop(0, n_h_chunks, h_chunk, y0,
                                  unroll=n_h_chunks <= 8)
        y = y + b2

        # TODO(synk): dropout omitted (inference mode / identity at eval).
        z = y + x_f32                                    # residual

        # LayerNormalization (unbiased std, eps added to the std, then affine).
        d = z.shape[-1]
        mu = jnp.mean(z, axis=-1, keepdims=True)
        diff = z - mu
        var = jnp.sum(diff * diff, axis=-1, keepdims=True) / (d - 1)
        inv = pl.reciprocal(jnp.sqrt(var) + LN_EPS, approx=recip_approx)
        o_ref[...] = (diff * (inv * g) + beta).astype(o_ref.dtype)

    return kernel


def positionwise_feed_forward(x, w1, b1, w2, b2, gamma, beta, *,
                              tm=512, th=512, matmul_dtype=jnp.bfloat16):
    """x: (B, L, d_hid). w1: (d_hid, d_inner). w2: (d_inner, d_hid)."""
    B, L, D = x.shape
    H = w1.shape[1]
    N = B * L

    # Hidden-axis chunk size: must evenly divide H (chunks of W1 columns /
    # W2 rows); prefer lane-aligned sizes.  Falls back to th_eff = H.
    th_eff = H
    if H > th:
        for cand in (th, 512, 256, 128):
            if 0 < cand <= th and H % cand == 0:
                th_eff = cand
                break
    n_h = H // th_eff

    w_bytes = jnp.dtype(matmul_dtype).itemsize
    x_bytes = jnp.dtype(x.dtype).itemsize

    # Generation-aware VMEM budget (leave headroom for compiler scratch):
    # ~48 MiB usable on v7x (64 MiB physical), ~100 MiB on v5e/v6e (128 MiB).
    try:
        vmem_cap = int(pltpu.get_tpu_info().vmem_capacity_bytes)
    except Exception:  # query unavailable -> assume smallest-VMEM chip (v7x)
        vmem_cap = 64 * 1024 * 1024
    budget = max(32 * 1024 * 1024,
                 min(int(0.8 * vmem_cap), vmem_cap - 16 * 1024 * 1024))

    weights_vmem = 2 * (2 * D * H) * w_bytes          # w1 + w2, double-buffered
    const_vmem = 2 * (H + 3 * D) * 4                  # b1, b2, gamma, beta

    def tile_bytes(t):
        act = 2 * t * D * (x_bytes + x_bytes)         # x + out, double-buffered
        hid = t * th_eff * (4 + w_bytes)              # f32 hidden + matmul-dtype copy
        acc = t * D * (4 + w_bytes)                   # f32 accumulator + x_mm
        return act + hid + acc

    tm_fit = _round_up(max(8, tm), 8)
    while tm_fit > 8 and weights_vmem + const_vmem + tile_bytes(tm_fit) > budget:
        tm_fit = max(8, _round_up(tm_fit // 2, 8))

    # Keep >= 2 row tiles when possible so the "parallel" axis can shard
    # across both TensorCores on v7x.
    row_cap = _round_up(-(-N // 2), 8) if N > 8 else 8
    tm_eff = max(8, min(tm_fit, row_cap))
    grid_rows = -(-N // tm_eff)                       # cdiv; tail tile masked by Pallas

    x2d = x.reshape(N, D)                             # native dtype; no host upcast/pad
    w1r = (w1.astype(matmul_dtype)
             .reshape(D, n_h, th_eff).transpose(1, 0, 2))    # (nH, D, th)
    w2r = w2.astype(matmul_dtype).reshape(n_h, th_eff, D)    # (nH, th, D)
    b1r = b1.astype(jnp.float32).reshape(n_h, 1, th_eff)
    b2_2d = b2.reshape(1, D).astype(jnp.float32)
    g_2d = gamma.reshape(1, D).astype(jnp.float32)
    beta_2d = beta.reshape(1, D).astype(jnp.float32)

    vmem_needed = weights_vmem + const_vmem + tile_bytes(tm_eff)
    vmem_limit = int(min(budget,
                         max(16 * 1024 * 1024, vmem_needed + 8 * 1024 * 1024)))

    recip_approx = bool(jnp.dtype(matmul_dtype) != jnp.dtype(jnp.float32))

    grid_spec = pltpu.PrefetchScalarGridSpec(
        num_scalar_prefetch=0,
        grid=(grid_rows,),
        in_specs=[
            pl.BlockSpec((tm_eff, D), lambda i: (i, 0)),           # x rows (tiled)
            pl.BlockSpec((n_h, D, th_eff), lambda i: (0, 0, 0)),   # w1 (resident)
            pl.BlockSpec((n_h, 1, th_eff), lambda i: (0, 0, 0)),   # b1
            pl.BlockSpec((n_h, th_eff, D), lambda i: (0, 0, 0)),   # w2 (resident)
            pl.BlockSpec((1, D), lambda i: (0, 0)),                # b2
            pl.BlockSpec((1, D), lambda i: (0, 0)),                # gamma
            pl.BlockSpec((1, D), lambda i: (0, 0)),                # beta
        ],
        out_specs=pl.BlockSpec((tm_eff, D), lambda i: (i, 0)),
    )

    out2d = pl.pallas_call(
        _make_ffn_kernel(n_h, recip_approx),
        out_shape=jax.ShapeDtypeStruct((N, D), x.dtype),
        grid_spec=grid_spec,
        compiler_params=pltpu.CompilerParams(
            dimension_semantics=("parallel",),
            vmem_limit_bytes=vmem_limit),
    )(x2d, w1r, b1r, w2r, b2_2d, g_2d, beta_2d)

    return out2d.reshape(B, L, D)


def _reference(x, w1, b1, w2, b2, gamma, beta):
    h = jnp.maximum(jnp.einsum("bld,dh->blh", x, w1) + b1, 0.0)
    y = jnp.einsum("blh,hd->bld", h, w2) + b2
    z = y + x
    mu = jnp.mean(z, axis=-1, keepdims=True)
    var = jnp.sum((z - mu) ** 2, axis=-1, keepdims=True) / (z.shape[-1] - 1)
    return (z - mu) / (jnp.sqrt(var) + LN_EPS) * gamma + beta


if __name__ == "__main__":
    B, L, d_hid, d_inner = 2, 8, 32, 64

    key = jax.random.PRNGKey(0)
    k1, k2, k3, k4, k5 = jax.random.split(key, 5)

    x = jax.random.normal(k1, (B, L, d_hid), dtype=jnp.float32)
    # Conv1d(d_hid, d_inner, 1) weight is (d_inner, d_hid, 1) in torch; stored
    # transposed here as a (d_hid, d_inner) matmul weight.
    w1 = jax.random.normal(k2, (d_hid, d_inner), dtype=jnp.float32) * 0.05
    b1 = jax.random.normal(k3, (d_inner,), dtype=jnp.float32) * 0.05
    w2 = jax.random.normal(k4, (d_inner, d_hid), dtype=jnp.float32) * 0.05
    b2 = jax.random.normal(k5, (d_hid,), dtype=jnp.float32) * 0.05
    gamma = jnp.ones((d_hid,), dtype=jnp.float32)
    beta = jnp.zeros((d_hid,), dtype=jnp.float32)

    ref = _reference(x, w1, b1, w2, b2, gamma, beta)

    # 1) Bit-careful path: f32 matmuls, exact reciprocal, tight tolerance.
    out_f32 = jax.block_until_ready(
        positionwise_feed_forward(x, w1, b1, w2, b2, gamma, beta,
                                  matmul_dtype=jnp.float32))
    assert jnp.allclose(out_f32, ref, atol=1e-4, rtol=1e-4), "f32 path mismatch"

    # 2) Default fast path: bf16 MXU matmuls (f32 accumulation) + approx recip.
    out_bf16 = jax.block_until_ready(
        positionwise_feed_forward(x, w1, b1, w2, b2, gamma, beta))
    assert jnp.allclose(out_bf16, ref, atol=3e-2, rtol=3e-2), "bf16 path mismatch"

    # 3) Multi-tile grid with a masked tail tile (N = 21 rows, TM = 8).
    B2, L2 = 3, 7
    x2 = jax.random.normal(jax.random.PRNGKey(1), (B2, L2, d_hid),
                           dtype=jnp.float32)
    ref2 = _reference(x2, w1, b1, w2, b2, gamma, beta)
    out2 = jax.block_until_ready(
        positionwise_feed_forward(x2, w1, b1, w2, b2, gamma, beta,
                                  tm=8, matmul_dtype=jnp.float32))
    assert jnp.allclose(out2, ref2, atol=1e-4, rtol=1e-4), "masked-tail mismatch"

    # 4) Hidden-axis chunking path (th < d_inner -> in-kernel fori_loop).
    out3 = jax.block_until_ready(
        positionwise_feed_forward(x, w1, b1, w2, b2, gamma, beta,
                                  th=32, matmul_dtype=jnp.float32))
    assert jnp.allclose(out3, ref, atol=1e-4, rtol=1e-4), "H-chunked path mismatch"

    print("KERNEL_OK")
</pallas_src>

<mosaic_0001>
module attributes {stable_mosaic.version = 11 : i64} {
  func.func @kernel(%arg0: i32, %arg1: memref<8x32xf32, #tpu.memory_space<vmem>>, %arg2: memref<1x32x64xf32, #tpu.memory_space<vmem>>, %arg3: memref<1x1x64xf32, #tpu.memory_space<vmem>>, %arg4: memref<1x64x32xf32, #tpu.memory_space<vmem>>, %arg5: memref<1x32xf32, #tpu.memory_space<vmem>>, %arg6: memref<1x32xf32, #tpu.memory_space<vmem>>, %arg7: memref<1x32xf32, #tpu.memory_space<vmem>>, %arg8: memref<8x32xf32, #tpu.memory_space<vmem>>) attributes {dimension_semantics = [#tpu.dimension_semantics<parallel>], iteration_bounds = array<i64: 2>, scalar_prefetch = 0 : i64, scratch_operands = 0 : i64, tpu.core_type = #tpu.core_type<tc>, window_params = [{transform_indices = @transform_0, window_bounds = array<i64: 8, 32>}, {pipeline_mode = #tpu.pipeline_mode<synchronous>, transform_indices = @transform_1, window_bounds = array<i64: 1, 32, 64>}, {pipeline_mode = #tpu.pipeline_mode<synchronous>, transform_indices = @transform_2, window_bounds = array<i64: 1, 1, 64>}, {pipeline_mode = #tpu.pipeline_mode<synchronous>, transform_indices = @transform_3, window_bounds = array<i64: 1, 64, 32>}, {pipeline_mode = #tpu.pipeline_mode<synchronous>, transform_indices = @transform_4, window_bounds = array<i64: 1, 32>}, {pipeline_mode = #tpu.pipeline_mode<synchronous>, transform_indices = @transform_5, window_bounds = array<i64: 1, 32>}, {pipeline_mode = #tpu.pipeline_mode<synchronous>, transform_indices = @transform_6, window_bounds = array<i64: 1, 32>}, {transform_indices = @transform_7, window_bounds = array<i64: 8, 32>}]} {
    %c0 = arith.constant 0 : index
    %c0_0 = arith.constant 0 : index
    %0 = vector.load %arg1[%c0, %c0_0] : memref<8x32xf32, #tpu.memory_space<vmem>>, vector<8x32xf32>
    %c0_1 = arith.constant 0 : index
    %c0_2 = arith.constant 0 : index
    %1 = vector.load %arg5[%c0_1, %c0_2] : memref<1x32xf32, #tpu.memory_space<vmem>>, vector<1x32xf32>
    %c0_3 = arith.constant 0 : index
    %c0_4 = arith.constant 0 : index
    %2 = vector.load %arg6[%c0_3, %c0_4] : memref<1x32xf32, #tpu.memory_space<vmem>>, vector<1x32xf32>
    %c0_5 = arith.constant 0 : index
    %c0_6 = arith.constant 0 : index
    %3 = vector.load %arg7[%c0_5, %c0_6] : memref<1x32xf32, #tpu.memory_space<vmem>>, vector<1x32xf32>
    %cst = arith.constant 0.000000e+00 : f32
    %4 = vector.broadcast %cst : f32 to vector<8x32xf32>
    %c0_7 = arith.constant 0 : index
    %c0_8 = arith.constant 0 : index
    %c0_9 = arith.constant 0 : index
    %5 = vector.load %arg2[%c0_7, %c0_8, %c0_9] : memref<1x32x64xf32, #tpu.memory_space<vmem>>, vector<1x32x64xf32>
    %6 = vector.shape_cast %5 : vector<1x32x64xf32> to vector<32x64xf32>
    %cst_10 = arith.constant dense<0.000000e+00> : vector<8x64xf32>
    %7 = tpu.matmul %0, %6, %cst_10 {dimension_numbers = #tpu.dot_dimension_numbers<[1], [0], [0], [1], [0, 0, 1, 1], [], []>} : vector<8x32xf32>, vector<32x64xf32>, vector<8x64xf32> -> vector<8x64xf32>
    %c0_11 = arith.constant 0 : index
    %c0_12 = arith.constant 0 : index
    %c0_13 = arith.constant 0 : index
    %8 = vector.load %arg3[%c0_11, %c0_12, %c0_13] : memref<1x1x64xf32, #tpu.memory_space<vmem>>, vector<1x1x64xf32>
    %9 = vector.shape_cast %8 : vector<1x1x64xf32> to vector<1x64xf32>
    %10 = vector.broadcast %9 : vector<1x64xf32> to vector<8x64xf32>
    %11 = arith.addf %7, %10 : vector<8x64xf32>
    %cst_14 = arith.constant 0.000000e+00 : f32
    %12 = vector.broadcast %cst_14 : f32 to vector<8x64xf32>
    %13 = arith.maximumf %11, %12 : vector<8x64xf32>
    %c0_15 = arith.constant 0 : index
    %c0_16 = arith.constant 0 : index
    %c0_17 = arith.constant 0 : index
    %14 = vector.load %arg4[%c0_15, %c0_16, %c0_17] : memref<1x64x32xf32, #tpu.memory_space<vmem>>, vector<1x64x32xf32>
    %15 = vector.shape_cast %14 : vector<1x64x32xf32> to vector<64x32xf32>
    %cst_18 = arith.constant dense<0.000000e+00> : vector<8x32xf32>
    %16 = tpu.matmul %13, %15, %cst_18 {dimension_numbers = #tpu.dot_dimension_numbers<[1], [0], [0], [1], [0, 0, 1, 1], [], []>} : vector<8x64xf32>, vector<64x32xf32>, vector<8x32xf32> -> vector<8x32xf32>
    %17 = arith.addf %4, %16 : vector<8x32xf32>
    %18 = vector.broadcast %1 : vector<1x32xf32> to vector<8x32xf32>
    %19 = arith.addf %17, %18 : vector<8x32xf32>
    %20 = arith.addf %19, %0 : vector<8x32xf32>
    %cst_19 = arith.constant dense<0.000000e+00> : vector<8xf32>
    %21 = vector.multi_reduction <add>, %20, %cst_19 [1] : vector<8x32xf32> to vector<8xf32>
    %22 = vector.shape_cast %21 : vector<8xf32> to vector<8x1xf32>
    %cst_20 = arith.constant 3.200000e+01 : f32
    %23 = vector.broadcast %cst_20 : f32 to vector<8x1xf32>
    %24 = arith.divf %22, %23 : vector<8x1xf32>
    %25 = vector.broadcast %24 : vector<8x1xf32> to vector<8x32xf32>
    %26 = arith.subf %20, %25 : vector<8x32xf32>
    %27 = arith.mulf %26, %26 : vector<8x32xf32>
    %cst_21 = arith.constant dense<0.000000e+00> : vector<8xf32>
    %28 = vector.multi_reduction <add>, %27, %cst_21 [1] : vector<8x32xf32> to vector<8xf32>
    %29 = vector.shape_cast %28 : vector<8xf32> to vector<8x1xf32>
    %cst_22 = arith.constant 3.100000e+01 : f32
    %30 = vector.broadcast %cst_22 : f32 to vector<8x1xf32>
    %31 = arith.divf %29, %30 : vector<8x1xf32>
    %32 = math.sqrt %31 : vector<8x1xf32>
    %cst_23 = arith.constant 1.000000e-03 : f32
    %33 = vector.broadcast %cst_23 : f32 to vector<8x1xf32>
    %34 = arith.addf %32, %33 : vector<8x1xf32>
    %35 = tpu.reciprocal %34 : vector<8x1xf32> -> vector<8x1xf32>
    %36 = vector.broadcast %35 : vector<8x1xf32> to vector<8x32xf32>
    %37 = vector.broadcast %2 : vector<1x32xf32> to vector<8x32xf32>
    %38 = arith.mulf %36, %37 : vector<8x32xf32>
    %39 = arith.mulf %26, %38 : vector<8x32xf32>
    %40 = vector.broadcast %3 : vector<1x32xf32> to vector<8x32xf32>
    %41 = arith.addf %39, %40 : vector<8x32xf32>
    %c0_24 = arith.constant 0 : index
    %c0_25 = arith.constant 0 : index
    %42 = vector.load %arg8[%c0_24, %c0_25] : memref<8x32xf32, #tpu.memory_space<vmem>>, vector<8x32xf32>
    tpu.vector_store %arg8[%c0_24, %c0_25], %41 {strides = array<i32>} : memref<8x32xf32, #tpu.memory_space<vmem>>, vector<8x32xf32>,
    return
  }
  func.func @transform_0(%arg0: i32) -> (i32, i32) {
    %c0_i32 = arith.constant 0 : i32
    %c0_i32_0 = arith.constant 0 : i32
    return %arg0, %c0_i32 : i32, i32
  }
  func.func @transform_1(%arg0: i32) -> (i32, i32, i32) {
    %c0_i32 = arith.constant 0 : i32
    %c0_i32_0 = arith.constant 0 : i32
    %c0_i32_1 = arith.constant 0 : i32
    %c0_i32_2 = arith.constant 0 : i32
    return %c0_i32, %c0_i32_0, %c0_i32_1 : i32, i32, i32
  }
  func.func @transform_2(%arg0: i32) -> (i32, i32, i32) {
    %c0_i32 = arith.constant 0 : i32
    %c0_i32_0 = arith.constant 0 : i32
    %c0_i32_1 = arith.constant 0 : i32
    %c0_i32_2 = arith.constant 0 : i32
    return %c0_i32, %c0_i32_0, %c0_i32_1 : i32, i32, i32
  }
  func.func @transform_3(%arg0: i32) -> (i32, i32, i32) {
    %c0_i32 = arith.constant 0 : i32
    %c0_i32_0 = arith.constant 0 : i32
    %c0_i32_1 = arith.constant 0 : i32
    %c0_i32_2 = arith.constant 0 : i32
    return %c0_i32, %c0_i32_0, %c0_i32_1 : i32, i32, i32
  }
  func.func @transform_4(%arg0: i32) -> (i32, i32) {
    %c0_i32 = arith.constant 0 : i32
    %c0_i32_0 = arith.constant 0 : i32
    %c0_i32_1 = arith.constant 0 : i32
    return %c0_i32, %c0_i32_0 : i32, i32
  }
  func.func @transform_5(%arg0: i32) -> (i32, i32) {
    %c0_i32 = arith.constant 0 : i32
    %c0_i32_0 = arith.constant 0 : i32
    %c0_i32_1 = arith.constant 0 : i32
    return %c0_i32, %c0_i32_0 : i32, i32
  }
  func.func @transform_6(%arg0: i32) -> (i32, i32) {
    %c0_i32 = arith.constant 0 : i32
    %c0_i32_0 = arith.constant 0 : i32
    %c0_i32_1 = arith.constant 0 : i32
    return %c0_i32, %c0_i32_0 : i32, i32
  }
  func.func @transform_7(%arg0: i32) -> (i32, i32) {
    %c0_i32 = arith.constant 0 : i32
    %c0_i32_0 = arith.constant 0 : i32
    return %arg0, %c0_i32 : i32, i32
  }
}

</mosaic_0001>

<llo_original>
// kernel: tpu_custom_call.1
$region0: #{tpu_custom_call.1}
  #allocation0 [shape = 'u32[]', space=smem, size = 0x4, offset = 0x4, fixed_abs, tag = 'smem constant byte address 0x4 - core index']
  #allocation1 [shape = 'u32[144,128]{1,0:T(1,128)}', space=vmem, size = 0x12000, scoped, tag = 'internal scratch']
  %s0 = inlined_call_operand.vmem [shape: f32[16,32], index: 0, kind: input, shape index: {}]
  %s1 = inlined_call_operand.vmem [shape: f32[1,32,64], index: 1, kind: input, shape index: {}]
  %s2 = inlined_call_operand.vmem [shape: f32[1,1,64], index: 2, kind: input, shape index: {}]
  %s3 = inlined_call_operand.vmem [shape: f32[1,64,32], index: 3, kind: input, shape index: {}]
  %s4 = inlined_call_operand.vmem [shape: f32[1,32], index: 4, kind: input, shape index: {}]
  %s5 = inlined_call_operand.vmem [shape: f32[1,32], index: 5, kind: input, shape index: {}]
  %s6 = inlined_call_operand.vmem [shape: f32[1,32], index: 6, kind: input, shape index: {}]
  %s7 = inlined_call_operand.hbm [shape: f32[16,32], index: 7, kind: output, shape index: {}]
  %s8 = sld [smem:[#allocation0]]
  $region61: #{tpu_custom_call.1} parent=0
    _
  %s10 = ssub.s32 1, %s8
  %s11 = scalar_select 0, %s10, %s8
  $region1: #{tpu_custom_call.1} parent=0
    #allocation2 [shape = 'u8[8192]{0}', space=vmem, size = 0x2000, scoped, tag = 'output window, operand 0']
    #allocation3 [shape = 's32[2]{0}', space=sflag, size = 0x8, scoped, tag = 'scoped memory for tpu_custom_call.1']
    %12 = vsyncpa [#allocation3], 0
    %s13 = scalar_lea.sflag [#allocation3], 1
    %14 = vsyncpa %s13, 0
    loop: start=0, step=1, limit=4
    $region2: #{tpu_custom_call.1} parent=1 // loop_pre_header
      _
    $region3: #{tpu_custom_call.1} parent=1 // loop_header
      %s16 = sphi 0, %s20
      %p17 = scmp.ge.s32.totalorder %s16, 4
      %s26 = sphi 0, %s28
      %s29 = sphi 0, %s26
      %s30 = sphi 0, %s29
      %s46 = sphi 0, %s30
      %s50 = sphi 0, %s50
      %s52 = sphi 0, %s50
      %s53 = sphi 0, %s52
      %s67 = sphi 0, %s53
      %s71 = sphi 0, %s71
      %s73 = sphi 0, %s71
      %s74 = sphi 0, %s73
      %s88 = sphi 0, %s74
      %s92 = sphi 0, %s92
      %s94 = sphi 0, %s92
      %s95 = sphi 0, %s94
      %s109 = sphi 0, %s95
      %s113 = sphi 0, %s113
      %s115 = sphi 0, %s113
      %s116 = sphi 0, %s115
      %s130 = sphi 0, %s116
      %s134 = sphi 0, %s134
      %s136 = sphi 0, %s134
      %s137 = sphi 0, %s136
      %s151 = sphi 0, %s137
      %s155 = sphi 0, %s155
      %s157 = sphi 0, %s155
      %s158 = sphi 0, %s157
      %s172 = sphi 0, %s158
      %s178 = sphi 0, %s180
      %s181 = sphi 0, %s178
      %s182 = sphi 0, %s181
      %s198 = sphi 0, %s182
    $region4: #{tpu_custom_call.1} parent=1 // loop_header_branch
      %19 = sbr.rel (%p17) target = $region8
    $region5: #{tpu_custom_call.1} parent=1 // loop_body
      %s21 = ssub.s32 %s16, 1
      %s22 = ssub.s32 %s16, 2
      %s23 = sadd.s32 %s16, 1
      %s24 = ssub.s32 %s16, %s23
      %p25 = scmp.eq.s32.totalorder %s24, 0
      %s27 = sadd.s32 %s26, 1
      %s28 = scalar_select %p25, %s26, %s27
      %p31 = pneg %p25
      %p32 = scmp.eq.s32.totalorder %s16, 1
      %p33 = por %p31, %p32
      %p34 = scmp.ne.s32.totalorder %s26, %s29
      %p35 = scmp.eq.s32.totalorder %s16, 0
      %p36 = por %p34, %p35
      %p37 = scmp.ne.s32.totalorder %s26, %s29
      %p38 = scmp.eq.s32.totalorder %s21, 1
      %p39 = por %p37, %p38
      %p40 = scmp.ne.s32.totalorder %s29, %s30
      %p41 = scmp.eq.s32.totalorder %s21, 0
      %p42 = por %p40, %p41
      %p43 = scmp.ne.s32.totalorder %s29, %s30
      %p44 = scmp.eq.s32.totalorder %s22, 1
      %p45 = por %p43, %p44
      %p47 = scmp.ne.s32.totalorder %s30, %s46
      %p48 = scmp.eq.s32.totalorder %s22, 0
      %p49 = por %p47, %p48
      %s51 = sadd.s32 %s50, 1
      %p54 = scmp.eq.s32.totalorder %s16, 1
      %p55 = scmp.ne.s32.totalorder %s50, %s52
      %p56 = scmp.eq.s32.totalorder %s16, 0
      %p57 = por %p55, %p56
      %p58 = scmp.ne.s32.totalorder %s50, %s52
      %p59 = scmp.eq.s32.totalorder %s21, 1
      %p60 = por %p58, %p59
      %p61 = scmp.ne.s32.totalorder %s52, %s53
      %p62 = scmp.eq.s32.totalorder %s21, 0
      %p63 = por %p61, %p62
      %p64 = scmp.ne.s32.totalorder %s52, %s53
      %p65 = scmp.eq.s32.totalorder %s22, 1
      %p66 = por %p64, %p65
      %p68 = scmp.ne.s32.totalorder %s53, %s67
      %p69 = scmp.eq.s32.totalorder %s22, 0
      %p70 = por %p68, %p69
      %s72 = sadd.s32 %s71, 1
      %p75 = scmp.eq.s32.totalorder %s16, 1
      %p76 = scmp.ne.s32.totalorder %s71, %s73
      %p77 = scmp.eq.s32.totalorder %s16, 0
      %p78 = por %p76, %p77
      %p79 = scmp.ne.s32.totalorder %s71, %s73
      %p80 = scmp.eq.s32.totalorder %s21, 1
      %p81 = por %p79, %p80
      %p82 = scmp.ne.s32.totalorder %s73, %s74
      %p83 = scmp.eq.s32.totalorder %s21, 0
      %p84 = por %p82, %p83
      %p85 = scmp.ne.s32.totalorder %s73, %s74
      %p86 = scmp.eq.s32.totalorder %s22, 1
      %p87 = por %p85, %p86
      %p89 = scmp.ne.s32.totalorder %s74, %s88
      %p90 = scmp.eq.s32.totalorder %s22, 0
      %p91 = por %p89, %p90
      %s93 = sadd.s32 %s92, 1
      %p96 = scmp.eq.s32.totalorder %s16, 1
      %p97 = scmp.ne.s32.totalorder %s92, %s94
      %p98 = scmp.eq.s32.totalorder %s16, 0
      %p99 = por %p97, %p98
      %p100 = scmp.ne.s32.totalorder %s92, %s94
      %p101 = scmp.eq.s32.totalorder %s21, 1
      %p102 = por %p100, %p101
      %p103 = scmp.ne.s32.totalorder %s94, %s95
      %p104 = scmp.eq.s32.totalorder %s21, 0
      %p105 = por %p103, %p104
      %p106 = scmp.ne.s32.totalorder %s94, %s95
      %p107 = scmp.eq.s32.totalorder %s22, 1
      %p108 = por %p106, %p107
      %p110 = scmp.ne.s32.totalorder %s95, %s109
      %p111 = scmp.eq.s32.totalorder %s22, 0
      %p112 = por %p110, %p111
      %s114 = sadd.s32 %s113, 1
      %p117 = scmp.eq.s32.totalorder %s16, 1
      %p118 = scmp.ne.s32.totalorder %s113, %s115
      %p119 = scmp.eq.s32.totalorder %s16, 0
      %p120 = por %p118, %p119
      %p121 = scmp.ne.s32.totalorder %s113, %s115
      %p122 = scmp.eq.s32.totalorder %s21, 1
      %p123 = por %p121, %p122
      %p124 = scmp.ne.s32.totalorder %s115, %s116
      %p125 = scmp.eq.s32.totalorder %s21, 0
      %p126 = por %p124, %p125
      %p127 = scmp.ne.s32.totalorder %s115, %s116
      %p128 = scmp.eq.s32.totalorder %s22, 1
      %p129 = por %p127, %p128
      %p131 = scmp.ne.s32.totalorder %s116, %s130
      %p132 = scmp.eq.s32.totalorder %s22, 0
      %p133 = por %p131, %p132
      %s135 = sadd.s32 %s134, 1
      %p138 = scmp.eq.s32.totalorder %s16, 1
      %p139 = scmp.ne.s32.totalorder %s134, %s136
      %p140 = scmp.eq.s32.totalorder %s16, 0
      %p141 = por %p139, %p140
      %p142 = scmp.ne.s32.totalorder %s134, %s136
      %p143 = scmp.eq.s32.totalorder %s21, 1
      %p144 = por %p142, %p143
      %p145 = scmp.ne.s32.totalorder %s136, %s137
      %p146 = scmp.eq.s32.totalorder %s21, 0
      %p147 = por %p145, %p146
      %p148 = scmp.ne.s32.totalorder %s136, %s137
      %p149 = scmp.eq.s32.totalorder %s22, 1
      %p150 = por %p148, %p149
      %p152 = scmp.ne.s32.totalorder %s137, %s151
      %p153 = scmp.eq.s32.totalorder %s22, 0
      %p154 = por %p152, %p153
      %s156 = sadd.s32 %s155, 1
      %p159 = scmp.eq.s32.totalorder %s16, 1
      %p160 = scmp.ne.s32.totalorder %s155, %s157
      %p161 = scmp.eq.s32.totalorder %s16, 0
      %p162 = por %p160, %p161
      %p163 = scmp.ne.s32.totalorder %s155, %s157
      %p164 = scmp.eq.s32.totalorder %s21, 1
      %p165 = por %p163, %p164
      %p166 = scmp.ne.s32.totalorder %s157, %s158
      %p167 = scmp.eq.s32.totalorder %s21, 0
      %p168 = por %p166, %p167
      %p169 = scmp.ne.s32.totalorder %s157, %s158
      %p170 = scmp.eq.s32.totalorder %s22, 1
      %p171 = por %p169, %p170
      %p173 = scmp.ne.s32.totalorder %s158, %s172
      %p174 = scmp.eq.s32.totalorder %s22, 0
      %p175 = por %p173, %p174
      %s176 = ssub.s32 %s16, %s23
      %p177 = scmp.eq.s32.totalorder %s176, 0
      %s179 = sadd.s32 %s178, 1
      %s180 = scalar_select %p177, %s178, %s179
      %p183 = pneg %p177
      %p184 = scmp.eq.s32.totalorder %s16, 1
      %p185 = por %p183, %p184
      %p186 = scmp.ne.s32.totalorder %s178, %s181
      %p187 = scmp.eq.s32.totalorder %s16, 0
      %p188 = por %p186, %p187
      %p189 = scmp.ne.s32.totalorder %s178, %s181
      %p190 = scmp.eq.s32.totalorder %s21, 1
      %p191 = por %p189, %p190
      %p192 = scmp.ne.s32.totalorder %s181, %s182
      %p193 = scmp.eq.s32.totalorder %s21, 0
      %p194 = por %p192, %p193
      %p195 = scmp.ne.s32.totalorder %s181, %s182
      %p196 = scmp.eq.s32.totalorder %s22, 1
      %p197 = por %p195, %p196
      %p199 = scmp.ne.s32.totalorder %s182, %s198
      %p200 = scmp.eq.s32.totalorder %s22, 0
      %p201 = por %p199, %p200
      %p202 = scmp.le.s32.totalorder 1, %s16
      %p203 = scmp.lt.s32.totalorder %s16, 3
      %p204 = pnand %p202, %p203
      %p205 = pneg %p204
      // Predicated region
      $region9: #{tpu_custom_call.1} parent=5 // pred_check
        _
      $region10: #{tpu_custom_call.1} parent=5 // pred_check_branch
        %207 = sbr.rel (%p204) target = $region12
      $region11: #{tpu_custom_call.1} parent=5 // pred_region
        %s208 = ssub.s32 %s16, 1
        // Predicated region
        $region13: #{tpu_custom_call.1} parent=11 // pred_check
          %p209 = pneg %p63
        $region14: #{tpu_custom_call.1} parent=11 // pred_check_branch
          %211 = sbr.rel (%p209) target = $region16
        $region15: #{tpu_custom_call.1} parent=11 // pred_region
          _
        $region16: #{tpu_custom_call.1} parent=11 // pred_fallthru
          _
        // Predicated region
        $region17: #{tpu_custom_call.1} parent=11 // pred_check
          %p212 = pneg %p84
        $region18: #{tpu_custom_call.1} parent=11 // pred_check_branch
          %214 = sbr.rel (%p212) target = $region20
        $region19: #{tpu_custom_call.1} parent=11 // pred_region
          _
        $region20: #{tpu_custom_call.1} parent=11 // pred_fallthru
          _
        // Predicated region
        $region21: #{tpu_custom_call.1} parent=11 // pred_check
          %p215 = pneg %p105
        $region22: #{tpu_custom_call.1} parent=11 // pred_check_branch
          %217 = sbr.rel (%p215) target = $region24
        $region23: #{tpu_custom_call.1} parent=11 // pred_region
          _
        $region24: #{tpu_custom_call.1} parent=11 // pred_fallthru
          _
        // Predicated region
        $region25: #{tpu_custom_call.1} parent=11 // pred_check
          %p218 = pneg %p126
        $region26: #{tpu_custom_call.1} parent=11 // pred_check_branch
          %220 = sbr.rel (%p218) target = $region28
        $region27: #{tpu_custom_call.1} parent=11 // pred_region
          _
        $region28: #{tpu_custom_call.1} parent=11 // pred_fallthru
          _
        // Predicated region
        $region29: #{tpu_custom_call.1} parent=11 // pred_check
          %p221 = pneg %p147
        $region30: #{tpu_custom_call.1} parent=11 // pred_check_branch
          %223 = sbr.rel (%p221) target = $region32
        $region31: #{tpu_custom_call.1} parent=11 // pred_region
          _
        $region32: #{tpu_custom_call.1} parent=11 // pred_fallthru
          _
        // Predicated region
        $region33: #{tpu_custom_call.1} parent=11 // pred_check
          %p224 = pneg %p168
        $region34: #{tpu_custom_call.1} parent=11 // pred_check_branch
          %226 = sbr.rel (%p224) target = $region36
        $region35: #{tpu_custom_call.1} parent=11 // pred_region
          _
        $region36: #{tpu_custom_call.1} parent=11 // pred_fallthru
          _
      $region12: #{tpu_custom_call.1} parent=5 // pred_fallthru
        _
      %p227 = scmp.lt.s32.totalorder %s16, 2
      // Predicated region
      $region37: #{tpu_custom_call.1} parent=5 // pred_check
        %p228 = pneg %p227
      $region38: #{tpu_custom_call.1} parent=5 // pred_check_branch
        %230 = sbr.rel (%p228) target = $region40
      $region39: #{tpu_custom_call.1} parent=5 // pred_region
        // Predicated region
        $region41: #{tpu_custom_call.1} parent=39 // pred_check
          %p231 = pneg %p36
        $region42: #{tpu_custom_call.1} parent=39 // pred_check_branch
          %233 = sbr.rel (%p231) target = $region44
        $region43: #{tpu_custom_call.1} parent=39 // pred_region
          %p234 = scmp.lt.s32.totalorder %s16, 1
          %s235 = scalar_select %p234, %s16, 1
          %s236 = smul.addr %s235, 8
          %s237 = scalar_lea.vmem %s0, %s236
        $region44: #{tpu_custom_call.1} parent=39 // pred_fallthru
          _
      $region40: #{tpu_custom_call.1} parent=5 // pred_fallthru
        _
      %p238 = scmp.le.s32.totalorder 1, %s16
      %p239 = scmp.lt.s32.totalorder %s16, 3
      %p240 = pnand %p238, %p239
      %p241 = pneg %p240
      // Predicated region
      $region45: #{tpu_custom_call.1} parent=5 // pred_check
        _
      $region46: #{tpu_custom_call.1} parent=5 // pred_check_branch
        %243 = sbr.rel (%p240) target = $region48
      $region47: #{tpu_custom_call.1} parent=5 // pred_region
        %s244 = ssub.s32 %s16, 1
        %p245 = scmp.lt.s32.totalorder %s21, 1
        %s246 = scalar_select %p245, %s21, 1
        %s247 = smul.addr %s246, 8
        %s248 = scalar_lea.vmem %s0, %s247
        %p249 = pneg %p42
        %p250 = pneg %p39
        %p251 = pneg %p63
        %p252 = pneg %p60
        %p253 = pneg %p84
        %p254 = pneg %p81
        %p255 = pneg %p105
        %p256 = pneg %p102
        %p257 = pneg %p126
        %p258 = pneg %p123
        %p259 = pneg %p147
        %p260 = pneg %p144
        %p261 = pneg %p168
        %p262 = pneg %p165
        %p263 = pneg %p194
        %p264 = pneg %p191
        %s265 = sand.u32 %s181, 1
        %s266 = scalar_lea.sflag [#allocation3], %s265
        %s267 = sand.u32 %s181, 1
        %s268 = smul.addr %s267, 8
        %s269 = scalar_lea.vmem [#allocation2], %s268
        %p270 = scmp.lt.s32.totalorder %s21, 1
        %s271 = scalar_select %p270, %s21, 1
        %s272 = smul.addr %s271, 8
        %s273 = scalar_lea.vmem %s0, %s272
        %v274 = vld [vmem:[%s273] sm:$0xff]
        %v275 = vld [vmem:[%s4] sm:$0x1]
        %v276 = vld [vmem:[%s5] sm:$0x1]
        %v277 = vld [vmem:[%s6] sm:$0x1]
        %v278 = vld [vmem:[%s1] sm:$0xff]
        %v279 = vld [vmem:[%s1 + $0x8] sm:$0xff]
        %v280 = vld [vmem:[%s1 + $0x10] sm:$0xff]
        %v281 = vld [vmem:[%s1 + $0x18] sm:$0xff]
        %v282 = vld [vmem:[%s2] sm:$0x1]
        %v284 = vlaneseq
        %v285 = vshrl.u32 %v284, 7
        %v286 = vsub.s32 0, %v285
        %v287 = vrot.slane %v282, %v286
        %vm289 = vcmask 261120
        %v291 = vsel %vm289, %v274, 0
        %293 = vmatprep.subr.mxu0 0.0
        %294 = vmatpush1.msra.mxu0 %v278
        %295 = vmatprep.subr.mxu0 0.0
        %296 = vmatpush1.msra.mxu0 %v279
        %297 = vmatprep.subr.mxu0 0.0
        %298 = vmatpush1.msra.mxu0 %v280
        %299 = vmatprep.subr.mxu0 0.0
        %300 = vmatpush1.msra.mxu0 %v281
        %301 = vmatprep.subr.mxu0 0.0
        %302 = vmatpush1.msra.mxu0 0.0
        %303 = vmatprep.subr.mxu0 0.0
        %304 = vmatpush1.msra.mxu0 0.0
        %305 = vmatprep.subr.mxu0 0.0
        %306 = vmatpush1.msra.mxu0 0.0
        %307 = vmatprep.subr.mxu0 0.0
        %308 = vmatpush1.msra.mxu0 0.0
        %309 = vmatprep.subr.mxu0 0.0
        %310 = vmatpush1.msra.mxu0 0.0
        %311 = vmatprep.subr.mxu0 0.0
        %312 = vmatpush1.msra.mxu0 0.0
        %313 = vmatprep.subr.mxu0 0.0
        %314 = vmatpush1.msra.mxu0 0.0
        %315 = vmatprep.subr.mxu0 0.0
        %316 = vmatpush1.msra.mxu0 0.0
        %317 = vmatprep.subr.mxu0 0.0
        %318 = vmatpush1.msra.mxu0 0.0
        %319 = vmatprep.subr.mxu0 0.0
        %320 = vmatpush1.msra.mxu0 0.0
        %321 = vmatprep.subr.mxu0 0.0
        %322 = vmatpush1.msra.mxu0 0.0
        %323 = vmatprep.subr.mxu0 0.0
        %324 = vmatpush1.msra.mxu0 0.0
        %325 = vmatprep.subr.mxu0 0.0
        %326 = vmatpush1.msra.mxu0 0.0
        %327 = vmatprep.subr.mxu0 0.0
        %328 = vmatpush1.msra.mxu0 0.0
        %329 = vmatprep.subr.mxu0 0.0
        %330 = vmatpush1.msra.mxu0 0.0
        %331 = vmatprep.subr.mxu0 0.0
        %332 = vmatpush1.msra.mxu0 0.0
        %333 = vmatprep.subr.mxu0 0.0
        %334 = vmatpush1.msra.mxu0 0.0
        %335 = vmatprep.subr.mxu0 0.0
        %336 = vmatpush1.msra.mxu0 0.0
        %337 = vmatprep.subr.mxu0 0.0
        %338 = vmatpush1.msra.mxu0 0.0
        %339 = vmatprep.subr.mxu0 0.0
        %340 = vmatpush1.msra.mxu0 0.0
        %341 = vmatprep.subr.mxu0 0.0
        %342 = vmatpush1.msra.mxu0 0.0
        %343 = vmatprep.subr.mxu0 0.0
        %344 = vmatpush1.msra.mxu0 0.0
        %345 = vmatprep.subr.mxu0 0.0
        %346 = vmatpush1.msra.mxu0 0.0
        %347 = vmatprep.subr.mxu0 0.0
        %348 = vmatpush1.msra.mxu0 0.0
        %349 = vmatprep.subr.mxu0 0.0
        %350 = vmatpush1.msra.mxu0 0.0
        %351 = vmatprep.subr.mxu0 0.0
        %352 = vmatpush1.msra.mxu0 0.0
        %353 = vmatprep.subr.mxu0 0.0
        %354 = vmatpush1.msra.mxu0 0.0
        %355 = vmatprep.subr.mxu0 0.0
        %356 = vmatpush1.msra.mxu0 0.0
        %357 = vmatprep.mubr.f32.mxu0 0.0
        %358 = vmatmul.mubr.f32.gmra.mrb[0].mxu0 %v291
        %v359 = vpop.f32.mrb[0].mxu0
        %v360 = vadd.f32 %v287, %v359
        %v361 = vpop.f32.mrb[0].mxu0
        %362 = vdwg.mxu0
        %v363 = vmax.f32 %v360, 0.0
        %v364 = vld [vmem:[%s3] sm:$0xff]
        %v365 = vld [vmem:[%s3 + $0x8] sm:$0xff]
        %v366 = vld [vmem:[%s3 + $0x10] sm:$0xff]
        %v367 = vld [vmem:[%s3 + $0x18] sm:$0xff]
        %v368 = vld [vmem:[%s3 + $0x20] sm:$0xff]
        %v369 = vld [vmem:[%s3 + $0x28] sm:$0xff]
        %v370 = vld [vmem:[%s3 + $0x30] sm:$0xff]
        %v371 = vld [vmem:[%s3 + $0x38] sm:$0xff]
        %v373 = vlaneseq
        %v374 = vshrl.u32 %v373, 7
        %v375 = vsub.s32 0, %v374
        %v376 = vrot.slane %v275, %v375
        %vm378 = vcmask 523264
        %v380 = vsel %vm378, %v363, 0
        %382 = vmatprep.subr.mxu0 0.0
        %383 = vmatpush1.msra.mxu0 %v364
        %384 = vmatprep.subr.mxu0 0.0
        %385 = vmatpush1.msra.mxu0 %v365
        %386 = vmatprep.subr.mxu0 0.0
        %387 = vmatpush1.msra.mxu0 %v366
        %388 = vmatprep.subr.mxu0 0.0
        %389 = vmatpush1.msra.mxu0 %v367
        %390 = vmatprep.subr.mxu0 0.0
        %391 = vmatpush1.msra.mxu0 %v368
        %392 = vmatprep.subr.mxu0 0.0
        %393 = vmatpush1.msra.mxu0 %v369
        %394 = vmatprep.subr.mxu0 0.0
        %395 = vmatpush1.msra.mxu0 %v370
        %396 = vmatprep.subr.mxu0 0.0
        %397 = vmatpush1.msra.mxu0 %v371
        %398 = vmatprep.subr.mxu0 0.0
        %399 = vmatpush1.msra.mxu0 0.0
        %400 = vmatprep.subr.mxu0 0.0
        %401 = vmatpush1.msra.mxu0 0.0
        %402 = vmatprep.subr.mxu0 0.0
        %403 = vmatpush1.msra.mxu0 0.0
        %404 = vmatprep.subr.mxu0 0.0
        %405 = vmatpush1.msra.mxu0 0.0
        %406 = vmatprep.subr.mxu0 0.0
        %407 = vmatpush1.msra.mxu0 0.0
        %408 = vmatprep.subr.mxu0 0.0
        %409 = vmatpush1.msra.mxu0 0.0
        %410 = vmatprep.subr.mxu0 0.0
        %411 = vmatpush1.msra.mxu0 0.0
        %412 = vmatprep.subr.mxu0 0.0
        %413 = vmatpush1.msra.mxu0 0.0
        %414 = vmatprep.subr.mxu0 0.0
        %415 = vmatpush1.msra.mxu0 0.0
        %416 = vmatprep.subr.mxu0 0.0
        %417 = vmatpush1.msra.mxu0 0.0
        %418 = vmatprep.subr.mxu0 0.0
        %419 = vmatpush1.msra.mxu0 0.0
        %420 = vmatprep.subr.mxu0 0.0
        %421 = vmatpush1.msra.mxu0 0.0
        %422 = vmatprep.subr.mxu0 0.0
        %423 = vmatpush1.msra.mxu0 0.0
        %424 = vmatprep.subr.mxu0 0.0
        %425 = vmatpush1.msra.mxu0 0.0
        %426 = vmatprep.subr.mxu0 0.0
        %427 = vmatpush1.msra.mxu0 0.0
        %428 = vmatprep.subr.mxu0 0.0
        %429 = vmatpush1.msra.mxu0 0.0
        %430 = vmatprep.subr.mxu0 0.0
        %431 = vmatpush1.msra.mxu0 0.0
        %432 = vmatprep.subr.mxu0 0.0
        %433 = vmatpush1.msra.mxu0 0.0
        %434 = vmatprep.subr.mxu0 0.0
        %435 = vmatpush1.msra.mxu0 0.0
        %436 = vmatprep.subr.mxu0 0.0
        %437 = vmatpush1.msra.mxu0 0.0
        %438 = vmatprep.subr.mxu0 0.0
        %439 = vmatpush1.msra.mxu0 0.0
        %440 = vmatprep.subr.mxu0 0.0
        %441 = vmatpush1.msra.mxu0 0.0
        %442 = vmatprep.subr.mxu0 0.0
        %443 = vmatpush1.msra.mxu0 0.0
        %444 = vmatprep.subr.mxu0 0.0
        %445 = vmatpush1.msra.mxu0 0.0
        %446 = vmatprep.mubr.f32.mxu0 0.0
        %447 = vmatmul.mubr.f32.gmra.mrb[0].mxu0 %v380
        %v448 = vpop.f32.mrb[0].mxu0
        %v449 = vadd.f32 %v376, %v448
        %v450 = vpop.f32.mrb[0].mxu0
        %451 = vdwg.mxu0
        %v452 = vadd.f32 %v449, %v274
        %v453 = vsel %vm289, %v452, 0.0
        %454 = vadd.xlane.f32.xlu0 %v453
        %v455 = vpop.xlane.xlu0 %454
        %v456 = vrcp.pop 32.0
        %v457 = vmul.f32 %v455, %v456
        %v458 = vsub.f32 %v452, %v457
        %v459 = vmul.f32 %v458, %v458
        %v460 = vsel %vm289, %v459, 0.0
        %461 = vadd.xlane.f32.xlu0 %v460
        %v462 = vpop.xlane.xlu0 %461
        %v463 = vrcp.pop 31.0
        %v464 = vmul.f32 %v462, %v463
        %v465 = vrsqrt.pop %v464
        %v466 = vmul.f32 %v464, %v465
        %vm467 = vcmp.eq.f32.partialorder %v464, inf
        %v468 = vsel %vm467, %v464, %v466
        %vm469 = vcmp.eq.f32.partialorder %v464, 0.0
        %v470 = vand.u32 %v464, 2147483648
        %v471 = vsel %vm469, %v470, %v468
        %v472 = vadd.f32 %v471, 0.001
        %v473 = vrcp.pop %v472
        %v475 = vlaneseq
        %v476 = vshrl.u32 %v475, 7
        %v477 = vsub.s32 0, %v476
        %v478 = vrot.slane %v276, %v477
        %v480 = vmul.f32 %v473, %v478
        %v481 = vmul.f32 %v458, %v480
        %v483 = vlaneseq
        %v484 = vshrl.u32 %v483, 7
        %v485 = vsub.s32 0, %v484
        %v486 = vrot.slane %v277, %v485
        %v488 = vadd.f32 %v481, %v486
        %489 = vst.msk [vmem:[%s269] sm:$0xff] %vm289, %v488
        %s490 = sand.u32 %s181, 1
        %s491 = scalar_lea.sflag [#allocation3], %s490
        %s492 = sand.u32 %s181, 1
        %s493 = smul.addr %s492, 8
        %s494 = scalar_lea.vmem [#allocation2], %s493
        // Predicated region
        $region49: #{tpu_custom_call.1} parent=47 // pred_check
          %p495 = pneg %p191
        $region50: #{tpu_custom_call.1} parent=47 // pred_check_branch
          %497 = sbr.rel (%p495) target = $region52
        $region51: #{tpu_custom_call.1} parent=47 // pred_region
          %s499 = ssub.s32 128, 128
          %500 = vsyncadd %s491, %s499
          %s501 = smul.addr %s21, 128
          %s502 = scalar_lea.hbm %s7, %s501
          %s504 = sshll.u32 %s494, 4
          %s505 = int_to_ptr.vmem [resolvable:$true] %s504
          %507 = dma.vmem_to_hbm [thread:$0]  %s505, 128, %s502, %s491
        $region52: #{tpu_custom_call.1} parent=47 // pred_fallthru
          _
      $region48: #{tpu_custom_call.1} parent=5 // pred_fallthru
        _
      %p508 = scmp.le.s32.totalorder 2, %s16
      // Predicated region
      $region53: #{tpu_custom_call.1} parent=5 // pred_check
        %p509 = pneg %p508
      $region54: #{tpu_custom_call.1} parent=5 // pred_check_branch
        %511 = sbr.rel (%p509) target = $region56
      $region55: #{tpu_custom_call.1} parent=5 // pred_region
        %s512 = ssub.s32 %s16, 2
        // Predicated region
        $region57: #{tpu_custom_call.1} parent=55 // pred_check
          %p513 = pneg %p197
        $region58: #{tpu_custom_call.1} parent=55 // pred_check_branch
          %515 = sbr.rel (%p513) target = $region60
        $region59: #{tpu_custom_call.1} parent=55 // pred_region
          %s516 = sand.u32 %s182, 1
          %s517 = scalar_lea.sflag [#allocation3], %s516
          %s518 = sand.u32 %s182, 1
          %s519 = smul.addr %s518, 8
          %s520 = scalar_lea.vmem [#allocation2], %s519
          %521 = dma.done %s517, 128
        $region60: #{tpu_custom_call.1} parent=55 // pred_fallthru
          _
      $region56: #{tpu_custom_call.1} parent=5 // pred_fallthru
        _
    $region6: #{tpu_custom_call.1} parent=1 // loop_footer
      %s20 = sadd.s32 1, %s16
    $region7: #{tpu_custom_call.1} parent=1 // loop_footer_branch
      %15 = sbr.rel target = $region3
    $region8: #{tpu_custom_call.1} parent=1 // loop_exit
      _
    %522 = vsyncpa [#allocation3], 1
    %s523 = scalar_lea.sflag [#allocation3], 1
    %524 = vsyncpa %s523, 1

</llo_original>
